<compile_context>
chip_gen: v7x
topology: tpu7x:2x2x1
jax: 0.10.0
libtpu: 0.0.40
codegen_flags: <defaults>
</compile_context>

<pallas_src>
import jax
import jax.numpy as jnp
from jax.experimental import pallas as pl
from jax.experimental.pallas import tpu as pltpu


_LANE_COLS = 1024      # fixed lane-dense width: 8 vregs wide, multiple of 128
_SUBLANE_FOLD = 8      # rows folded per VPU partial-sum group


def _cdiv(a, b):
    return -(-a // b)


def _round_up(x, m):
    return _cdiv(x, m) * m


def _mse_partial_kernel(a_ref, b_ref, out_ref):
    """Accumulates per-core partial sums of (a - b)^2 into a (1, 8, C) block.

    Grid = (core_split, reduction_steps).  The output block index depends only
    on the core-split axis, so the block stays resident in VMEM across the
    whole "arbitrary" reduction axis and acts as the accumulator.  No XLU
    cross-lane reduction happens on the hot path.
    """
    step = pl.program_id(1)

    @pl.when(step == 0)
    def _init():
        out_ref[...] = jnp.zeros_like(out_ref)

    a = a_ref[...].astype(jnp.float32)
    b = b_ref[...].astype(jnp.float32)
    diff = a - b
    sq = diff * diff
    tile_rows, cols = sq.shape
    # Fold the row axis in groups of 8 sublanes.  The reshape only regroups
    # whole (8, 128) tiles, so the axis-0 sum lowers to pure VPU adds.
    folded = sq.reshape(tile_rows // _SUBLANE_FOLD, _SUBLANE_FOLD, cols).sum(axis=0)
    out_ref[...] += folded[None, :, :]


def mse_loss(embedding_1, embedding_2, *,
             vmem_budget_bytes=8 * 1024 * 1024,
             max_tile_rows=None,
             core_splits=2):
    """mean((embedding_1 - embedding_2)**2) over all elements, via Pallas."""
    assert embedding_1.shape == embedding_2.shape, "MSE inputs must match"
    n = int(embedding_1.size)
    cols = _LANE_COLS

    item_a = jnp.dtype(embedding_1.dtype).itemsize
    item_b = jnp.dtype(embedding_2.dtype).itemsize
    max_item = max(item_a, item_b)
    # dtype-aware sublane granularity: 8 rows (32-bit), 16 (16-bit), 32 (8-bit)
    sub = max(32 // item_a, 32 // item_b, 8)

    rows = _cdiv(n, cols)

    # Per-buffer row-tile budget: 2 inputs x 2 pipeline buffers share the budget.
    per_buf = vmem_budget_bytes // 4
    tile = max(sub, (per_buf // (cols * max_item)) // sub * sub)
    tile = min(tile, _round_up(rows, sub))
    if max_tile_rows is not None:
        tile = min(tile, max(sub, (max_tile_rows // sub) * sub))

    # Split across TensorCores only when there is more than one block of work
    # (up to ~2x on v7x's two cores; harmless serialization on v5e/v6e).
    p = core_splits if rows > tile else 1
    blocks_per_core = _cdiv(rows, p * tile)
    rows_total = p * blocks_per_core * tile

    flat_a = embedding_1.reshape(-1)
    flat_b = embedding_2.reshape(-1)
    pad = rows_total * cols - n
    if pad:
        flat_a = jnp.pad(flat_a, (0, pad))
        flat_b = jnp.pad(flat_b, (0, pad))
    a2 = flat_a.reshape(rows_total, cols)
    b2 = flat_b.reshape(rows_total, cols)

    cost = pl.CostEstimate(
        flops=3 * n,
        transcendentals=0,
        bytes_accessed=n * (item_a + item_b) + p * _SUBLANE_FOLD * cols * 4,
    )
    vmem_limit = min(64 * 1024 * 1024,
                     max(16 * 1024 * 1024, 8 * tile * cols * max_item))

    partials = pl.pallas_call(
        _mse_partial_kernel,
        out_shape=jax.ShapeDtypeStruct((p, _SUBLANE_FOLD, cols), jnp.float32),
        grid_spec=pltpu.PrefetchScalarGridSpec(
            num_scalar_prefetch=0,
            grid=(p, blocks_per_core),
            in_specs=[
                pl.BlockSpec((tile, cols),
                             lambda c, i: (c * blocks_per_core + i, 0)),
                pl.BlockSpec((tile, cols),
                             lambda c, i: (c * blocks_per_core + i, 0)),
            ],
            out_specs=pl.BlockSpec((1, _SUBLANE_FOLD, cols),
                                   lambda c, i: (c, 0, 0)),
        ),
        compiler_params=pltpu.CompilerParams(
            dimension_semantics=("parallel", "arbitrary"),
            vmem_limit_bytes=vmem_limit,
        ),
        cost_estimate=cost,
    )(a2, b2)

    out_dtype = jnp.promote_types(embedding_1.dtype, embedding_2.dtype)
    return (jnp.sum(partials) * jnp.float32(1.0 / n)).astype(out_dtype)


if __name__ == "__main__":
    key = jax.random.PRNGKey(0)
    k1, k2, k3, k4 = jax.random.split(key, 4)

    # Case 1: small aligned embeddings (batch=128, hidden=256) -> one block.
    e1 = jax.random.normal(k1, (128, 256), dtype=jnp.float32)
    e2 = jax.random.normal(k2, (128, 256), dtype=jnp.float32)
    loss = mse_loss(e1, e2)
    jax.block_until_ready(loss)
    ref = jnp.mean((e1 - e2) ** 2)
    assert jnp.allclose(loss, ref, rtol=1e-5, atol=1e-6), (loss, ref)

    # Case 2: awkward shape (odd rows, non-128 hidden) exercises zero-padding.
    o1 = jax.random.normal(k3, (7, 300), dtype=jnp.float32)
    o2 = jax.random.normal(k4, (7, 300), dtype=jnp.float32)
    loss2 = mse_loss(o1, o2)
    jax.block_until_ready(loss2)
    ref2 = jnp.mean((o1 - o2) ** 2)
    assert jnp.allclose(loss2, ref2, rtol=1e-5, atol=1e-6), (loss2, ref2)

    # Case 3: force the multi-block + two-core-split reduction path.
    loss3 = mse_loss(e1, e2, max_tile_rows=8)
    jax.block_until_ready(loss3)
    assert jnp.allclose(loss3, ref, rtol=1e-5, atol=1e-6), (loss3, ref)

    print("KERNEL_OK")
</pallas_src>

<mosaic_0001>
module attributes {stable_mosaic.version = 11 : i64} {
  func.func @_mse_partial_kernel(%arg0: i32, %arg1: i32, %arg2: memref<32x1024xf32, #tpu.memory_space<vmem>>, %arg3: memref<32x1024xf32, #tpu.memory_space<vmem>>, %arg4: memref<1x8x1024xf32, #tpu.memory_space<vmem>>) attributes {dimension_semantics = [#tpu.dimension_semantics<parallel>, #tpu.dimension_semantics<arbitrary>], iteration_bounds = array<i64: 1, 1>, scalar_prefetch = 0 : i64, scratch_operands = 0 : i64, tpu.core_type = #tpu.core_type<tc>, window_params = [{transform_indices = @transform_0, window_bounds = array<i64: 32, 1024>}, {transform_indices = @transform_1, window_bounds = array<i64: 32, 1024>}, {transform_indices = @transform_2, window_bounds = array<i64: 1, 8, 1024>}]} {
    %c0_i32 = arith.constant 0 : i32
    %0 = arith.cmpi eq, %arg1, %c0_i32 : i32
    %1 = arith.extui %0 : i1 to i32
    %c0_i32_0 = arith.constant 0 : i32
    %2 = arith.cmpi ne, %1, %c0_i32_0 : i32
    scf.if %2 {
      %cst_10 = arith.constant 0.000000e+00 : f32
      %13 = vector.broadcast %cst_10 : f32 to vector<1x8x1024xf32>
      %c0_11 = arith.constant 0 : index
      %c0_12 = arith.constant 0 : index
      %c0_13 = arith.constant 0 : index
      %14 = vector.load %arg4[%c0_11, %c0_12, %c0_13] : memref<1x8x1024xf32, #tpu.memory_space<vmem>>, vector<1x8x1024xf32>
      tpu.vector_store %arg4[%c0_11, %c0_12, %c0_13], %13 {strides = array<i32>} : memref<1x8x1024xf32, #tpu.memory_space<vmem>>, vector<1x8x1024xf32>,
    } else {
    }
    %c0 = arith.constant 0 : index
    %c0_1 = arith.constant 0 : index
    %3 = vector.load %arg2[%c0, %c0_1] : memref<32x1024xf32, #tpu.memory_space<vmem>>, vector<32x1024xf32>
    %c0_2 = arith.constant 0 : index
    %c0_3 = arith.constant 0 : index
    %4 = vector.load %arg3[%c0_2, %c0_3] : memref<32x1024xf32, #tpu.memory_space<vmem>>, vector<32x1024xf32>
    %5 = arith.subf %3, %4 : vector<32x1024xf32>
    %6 = arith.mulf %5, %5 : vector<32x1024xf32>
    %7 = vector.shape_cast %6 : vector<32x1024xf32> to vector<4x8x1024xf32>
    %cst = arith.constant dense<0.000000e+00> : vector<8x1024xf32>
    %8 = vector.multi_reduction <add>, %7, %cst [0] : vector<4x8x1024xf32> to vector<8x1024xf32>
    %c0_4 = arith.constant 0 : index
    %c0_5 = arith.constant 0 : index
    %c0_6 = arith.constant 0 : index
    %9 = vector.load %arg4[%c0_4, %c0_5, %c0_6] : memref<1x8x1024xf32, #tpu.memory_space<vmem>>, vector<1x8x1024xf32>
    %10 = vector.shape_cast %8 : vector<8x1024xf32> to vector<1x8x1024xf32>
    %11 = arith.addf %9, %10 : vector<1x8x1024xf32>
    %c0_7 = arith.constant 0 : index
    %c0_8 = arith.constant 0 : index
    %c0_9 = arith.constant 0 : index
    %12 = vector.load %arg4[%c0_7, %c0_8, %c0_9] : memref<1x8x1024xf32, #tpu.memory_space<vmem>>, vector<1x8x1024xf32>
    tpu.vector_store %arg4[%c0_7, %c0_8, %c0_9], %11 {strides = array<i32>} : memref<1x8x1024xf32, #tpu.memory_space<vmem>>, vector<1x8x1024xf32>,
    return
  }
  func.func @transform_0(%arg0: i32, %arg1: i32) -> (i32, i32) {
    %c1_i32 = arith.constant 1 : i32
    %0 = arith.muli %arg0, %c1_i32 : i32
    %1 = arith.addi %0, %arg1 : i32
    %c0_i32 = arith.constant 0 : i32
    %c0_i32_0 = arith.constant 0 : i32
    return %1, %c0_i32 : i32, i32
  }
  func.func @transform_1(%arg0: i32, %arg1: i32) -> (i32, i32) {
    %c1_i32 = arith.constant 1 : i32
    %0 = arith.muli %arg0, %c1_i32 : i32
    %1 = arith.addi %0, %arg1 : i32
    %c0_i32 = arith.constant 0 : i32
    %c0_i32_0 = arith.constant 0 : i32
    return %1, %c0_i32 : i32, i32
  }
  func.func @transform_2(%arg0: i32, %arg1: i32) -> (i32, i32, i32) {
    %c0_i32 = arith.constant 0 : i32
    %c0_i32_0 = arith.constant 0 : i32
    %c0_i32_1 = arith.constant 0 : i32
    return %arg0, %c0_i32, %c0_i32_0 : i32, i32, i32
  }
}

</mosaic_0001>

<llo_original>
// kernel: tpu_custom_call.1
$region0: #{tpu_custom_call.1}
  #allocation0 [shape = 'u32[]', space=smem, size = 0x4, offset = 0x4, fixed_abs, tag = 'smem constant byte address 0x4 - core index']
  #allocation1 [shape = 'u32[144,128]{1,0:T(1,128)}', space=vmem, size = 0x12000, scoped, tag = 'internal scratch']
  %s0 = inlined_call_operand.hbm [shape: f32[32,1024], index: 0, kind: input, shape index: {}]
  %s1 = inlined_call_operand.hbm [shape: f32[32,1024], index: 1, kind: input, shape index: {}]
  %s2 = inlined_call_operand.hbm [shape: f32[1,8,1024], index: 2, kind: output, shape index: {}]
  %s3 = sld [smem:[#allocation0]]
  $region30: #{tpu_custom_call.1} parent=0
    _
  %s5 = ssub.s32 1, %s3
  %s6 = scalar_select 0, %s5, %s3
  $region1: #{tpu_custom_call.1} parent=0
    #allocation2 [shape = 'u8[131072]{0}', space=vmem, size = 0x20000, scoped, tag = 'input window, operand 0, single buffered']
    #allocation3 [shape = 's32[1]{0}', space=sflag, size = 0x4, scoped, tag = 'scoped memory for tpu_custom_call.1']
    #allocation4 [shape = 's32[1]{0}', space=sflag, size = 0x4, scoped, tag = 'scoped memory for tpu_custom_call.1']
    #allocation5 [shape = 'u8[131072]{0}', space=vmem, size = 0x20000, scoped, tag = 'input window, operand 1, single buffered']
    #allocation6 [shape = 's32[1]{0}', space=sflag, size = 0x4, scoped, tag = 'scoped memory for tpu_custom_call.1']
    #allocation7 [shape = 'u8[32768]{0}', space=vmem, size = 0x8000, scoped, tag = 'output window, operand 0, single buffered']
    %7 = vsyncpa [#allocation3], 0
    %8 = vsyncpa [#allocation6], 0
    %9 = vsyncpa [#allocation4], 0
    // Predicated region
    $region2: #{tpu_custom_call.1} parent=1 // pred_check
      _
    $region3: #{tpu_custom_call.1} parent=1 // pred_check_branch
      %11 = sbr.rel (0) target = $region5
    $region4: #{tpu_custom_call.1} parent=1 // pred_region
      %s12 = sadd.s32 0, 0
      %s13 = smul.u32 4, %s12
      %s15 = ssub.s32 4096, 4096
      %16 = vsyncadd [#allocation3], %s15
      %s17 = smul.addr %s13, 8
      %s18 = smul.addr %s17, 128
      %s19 = scalar_lea.hbm %s0, %s18
      %s20 = sshll.u32 [#allocation2], 4
      %s21 = int_to_ptr.vmem [resolvable:$true] %s20
      %26 = dma.hbm_to_vmem [thread:$0]  %s19, 4096, %s21, [#allocation3], 1024, 1024, 64
    $region5: #{tpu_custom_call.1} parent=1 // pred_fallthru
      _
    // Predicated region
    $region6: #{tpu_custom_call.1} parent=1 // pred_check
      _
    $region7: #{tpu_custom_call.1} parent=1 // pred_check_branch
      %28 = sbr.rel (0) target = $region9
    $region8: #{tpu_custom_call.1} parent=1 // pred_region
      %s29 = sadd.s32 0, 0
      %s30 = smul.u32 4, %s29
      %s32 = ssub.s32 4096, 4096
      %33 = vsyncadd [#allocation6], %s32
      %s34 = smul.addr %s30, 8
      %s35 = smul.addr %s34, 128
      %s36 = scalar_lea.hbm %s1, %s35
      %s37 = sshll.u32 [#allocation5], 4
      %s38 = int_to_ptr.vmem [resolvable:$true] %s37
      %43 = dma.hbm_to_vmem [thread:$0]  %s36, 4096, %s38, [#allocation6], 1024, 1024, 64
    $region9: #{tpu_custom_call.1} parent=1 // pred_fallthru
      _
    // Predicated region
    $region10: #{tpu_custom_call.1} parent=1 // pred_check
      _
    $region11: #{tpu_custom_call.1} parent=1 // pred_check_branch
      %45 = sbr.rel (0) target = $region13
    $region12: #{tpu_custom_call.1} parent=1 // pred_region
      %46 = dma.done [#allocation3], 4096
    $region13: #{tpu_custom_call.1} parent=1 // pred_fallthru
      _
    // Predicated region
    $region14: #{tpu_custom_call.1} parent=1 // pred_check
      _
    $region15: #{tpu_custom_call.1} parent=1 // pred_check_branch
      %48 = sbr.rel (0) target = $region17
    $region16: #{tpu_custom_call.1} parent=1 // pred_region
      %49 = dma.done [#allocation6], 4096
    $region17: #{tpu_custom_call.1} parent=1 // pred_fallthru
      _
    %s50 = sadd.s32 0, 0
    %s51 = smul.u32 4, %s50
    %s52 = sadd.s32 0, 0
    %s53 = smul.u32 4, %s52
    %p54 = scmp.eq.s32.totalorder 0, 0
    // Predicated region
    $region18: #{tpu_custom_call.1} parent=1 // pred_check
      %p55 = pneg %p54
    $region19: #{tpu_custom_call.1} parent=1 // pred_check_branch
      %57 = sbr.rel (%p55) target = $region21
    $region20: #{tpu_custom_call.1} parent=1 // pred_region
      %58 = vst [vmem:[#allocation7] sm:$0xff] 0.0
      %59 = vst [vmem:[#allocation7 + $0x8] sm:$0xff] 0.0
      %60 = vst [vmem:[#allocation7 + $0x10] sm:$0xff] 0.0
      %61 = vst [vmem:[#allocation7 + $0x18] sm:$0xff] 0.0
      %62 = vst [vmem:[#allocation7 + $0x20] sm:$0xff] 0.0
      %63 = vst [vmem:[#allocation7 + $0x28] sm:$0xff] 0.0
      %64 = vst [vmem:[#allocation7 + $0x30] sm:$0xff] 0.0
      %65 = vst [vmem:[#allocation7 + $0x38] sm:$0xff] 0.0
    $region21: #{tpu_custom_call.1} parent=1 // pred_fallthru
      _
    %v66 = vld [vmem:[#allocation2] sm:$0xff]
    %v67 = vld [vmem:[#allocation2 + $0x8] sm:$0xff]
    %v68 = vld [vmem:[#allocation2 + $0x10] sm:$0xff]
    %v69 = vld [vmem:[#allocation2 + $0x18] sm:$0xff]
    %v70 = vld [vmem:[#allocation2 + $0x20] sm:$0xff]
    %v71 = vld [vmem:[#allocation2 + $0x28] sm:$0xff]
    %v72 = vld [vmem:[#allocation2 + $0x30] sm:$0xff]
    %v73 = vld [vmem:[#allocation2 + $0x38] sm:$0xff]
    %v74 = vld [vmem:[#allocation2 + $0x40] sm:$0xff]
    %v75 = vld [vmem:[#allocation2 + $0x48] sm:$0xff]
    %v76 = vld [vmem:[#allocation2 + $0x50] sm:$0xff]
    %v77 = vld [vmem:[#allocation2 + $0x58] sm:$0xff]
    %v78 = vld [vmem:[#allocation2 + $0x60] sm:$0xff]
    %v79 = vld [vmem:[#allocation2 + $0x68] sm:$0xff]
    %v80 = vld [vmem:[#allocation2 + $0x70] sm:$0xff]
    %v81 = vld [vmem:[#allocation2 + $0x78] sm:$0xff]
    %v82 = vld [vmem:[#allocation2 + $0x80] sm:$0xff]
    %v83 = vld [vmem:[#allocation2 + $0x88] sm:$0xff]
    %v84 = vld [vmem:[#allocation2 + $0x90] sm:$0xff]
    %v85 = vld [vmem:[#allocation2 + $0x98] sm:$0xff]
    %v86 = vld [vmem:[#allocation2 + $0xa0] sm:$0xff]
    %v87 = vld [vmem:[#allocation2 + $0xa8] sm:$0xff]
    %v88 = vld [vmem:[#allocation2 + $0xb0] sm:$0xff]
    %v89 = vld [vmem:[#allocation2 + $0xb8] sm:$0xff]
    %v90 = vld [vmem:[#allocation2 + $0xc0] sm:$0xff]
    %v91 = vld [vmem:[#allocation2 + $0xc8] sm:$0xff]
    %v92 = vld [vmem:[#allocation2 + $0xd0] sm:$0xff]
    %v93 = vld [vmem:[#allocation2 + $0xd8] sm:$0xff]
    %v94 = vld [vmem:[#allocation2 + $0xe0] sm:$0xff]
    %v95 = vld [vmem:[#allocation2 + $0xe8] sm:$0xff]
    %v96 = vld [vmem:[#allocation2 + $0xf0] sm:$0xff]
    %v97 = vld [vmem:[#allocation2 + $0xf8] sm:$0xff]
    %v98 = vld [vmem:[#allocation5] sm:$0xff]
    %v99 = vld [vmem:[#allocation5 + $0x8] sm:$0xff]
    %v100 = vld [vmem:[#allocation5 + $0x10] sm:$0xff]
    %v101 = vld [vmem:[#allocation5 + $0x18] sm:$0xff]
    %v102 = vld [vmem:[#allocation5 + $0x20] sm:$0xff]
    %v103 = vld [vmem:[#allocation5 + $0x28] sm:$0xff]
    %v104 = vld [vmem:[#allocation5 + $0x30] sm:$0xff]
    %v105 = vld [vmem:[#allocation5 + $0x38] sm:$0xff]
    %v106 = vld [vmem:[#allocation5 + $0x40] sm:$0xff]
    %v107 = vld [vmem:[#allocation5 + $0x48] sm:$0xff]
    %v108 = vld [vmem:[#allocation5 + $0x50] sm:$0xff]
    %v109 = vld [vmem:[#allocation5 + $0x58] sm:$0xff]
    %v110 = vld [vmem:[#allocation5 + $0x60] sm:$0xff]
    %v111 = vld [vmem:[#allocation5 + $0x68] sm:$0xff]
    %v112 = vld [vmem:[#allocation5 + $0x70] sm:$0xff]
    %v113 = vld [vmem:[#allocation5 + $0x78] sm:$0xff]
    %v114 = vld [vmem:[#allocation5 + $0x80] sm:$0xff]
    %v115 = vld [vmem:[#allocation5 + $0x88] sm:$0xff]
    %v116 = vld [vmem:[#allocation5 + $0x90] sm:$0xff]
    %v117 = vld [vmem:[#allocation5 + $0x98] sm:$0xff]
    %v118 = vld [vmem:[#allocation5 + $0xa0] sm:$0xff]
    %v119 = vld [vmem:[#allocation5 + $0xa8] sm:$0xff]
    %v120 = vld [vmem:[#allocation5 + $0xb0] sm:$0xff]
    %v121 = vld [vmem:[#allocation5 + $0xb8] sm:$0xff]
    %v122 = vld [vmem:[#allocation5 + $0xc0] sm:$0xff]
    %v123 = vld [vmem:[#allocation5 + $0xc8] sm:$0xff]
    %v124 = vld [vmem:[#allocation5 + $0xd0] sm:$0xff]
    %v125 = vld [vmem:[#allocation5 + $0xd8] sm:$0xff]
    %v126 = vld [vmem:[#allocation5 + $0xe0] sm:$0xff]
    %v127 = vld [vmem:[#allocation5 + $0xe8] sm:$0xff]
    %v128 = vld [vmem:[#allocation5 + $0xf0] sm:$0xff]
    %v129 = vld [vmem:[#allocation5 + $0xf8] sm:$0xff]
    %v130 = vsub.f32 %v66, %v98
    %v131 = vsub.f32 %v67, %v99
    %v132 = vsub.f32 %v68, %v100
    %v133 = vsub.f32 %v69, %v101
    %v134 = vsub.f32 %v70, %v102
    %v135 = vsub.f32 %v71, %v103
    %v136 = vsub.f32 %v72, %v104
    %v137 = vsub.f32 %v73, %v105
    %v138 = vsub.f32 %v74, %v106
    %v139 = vsub.f32 %v75, %v107
    %v140 = vsub.f32 %v76, %v108
    %v141 = vsub.f32 %v77, %v109
    %v142 = vsub.f32 %v78, %v110
    %v143 = vsub.f32 %v79, %v111
    %v144 = vsub.f32 %v80, %v112
    %v145 = vsub.f32 %v81, %v113
    %v146 = vsub.f32 %v82, %v114
    %v147 = vsub.f32 %v83, %v115
    %v148 = vsub.f32 %v84, %v116
    %v149 = vsub.f32 %v85, %v117
    %v150 = vsub.f32 %v86, %v118
    %v151 = vsub.f32 %v87, %v119
    %v152 = vsub.f32 %v88, %v120
    %v153 = vsub.f32 %v89, %v121
    %v154 = vsub.f32 %v90, %v122
    %v155 = vsub.f32 %v91, %v123
    %v156 = vsub.f32 %v92, %v124
    %v157 = vsub.f32 %v93, %v125
    %v158 = vsub.f32 %v94, %v126
    %v159 = vsub.f32 %v95, %v127
    %v160 = vsub.f32 %v96, %v128
    %v161 = vsub.f32 %v97, %v129
    %v162 = vmul.f32 %v130, %v130
    %v163 = vmul.f32 %v131, %v131
    %v164 = vmul.f32 %v132, %v132
    %v165 = vmul.f32 %v133, %v133
    %v166 = vmul.f32 %v134, %v134
    %v167 = vmul.f32 %v135, %v135
    %v168 = vmul.f32 %v136, %v136
    %v169 = vmul.f32 %v137, %v137
    %v170 = vmul.f32 %v138, %v138
    %v171 = vmul.f32 %v139, %v139
    %v172 = vmul.f32 %v140, %v140
    %v173 = vmul.f32 %v141, %v141
    %v174 = vmul.f32 %v142, %v142
    %v175 = vmul.f32 %v143, %v143
    %v176 = vmul.f32 %v144, %v144
    %v177 = vmul.f32 %v145, %v145
    %v178 = vmul.f32 %v146, %v146
    %v179 = vmul.f32 %v147, %v147
    %v180 = vmul.f32 %v148, %v148
    %v181 = vmul.f32 %v149, %v149
    %v182 = vmul.f32 %v150, %v150
    %v183 = vmul.f32 %v151, %v151
    %v184 = vmul.f32 %v152, %v152
    %v185 = vmul.f32 %v153, %v153
    %v186 = vmul.f32 %v154, %v154
    %v187 = vmul.f32 %v155, %v155
    %v188 = vmul.f32 %v156, %v156
    %v189 = vmul.f32 %v157, %v157
    %v190 = vmul.f32 %v158, %v158
    %v191 = vmul.f32 %v159, %v159
    %v192 = vmul.f32 %v160, %v160
    %v193 = vmul.f32 %v161, %v161
    %v194 = vadd.f32 %v162, %v170
    %v195 = vadd.f32 %v194, %v178
    %v196 = vadd.f32 %v195, %v186
    %v197 = vadd.f32 %v163, %v171
    %v198 = vadd.f32 %v197, %v179
    %v199 = vadd.f32 %v198, %v187
    %v200 = vadd.f32 %v164, %v172
    %v201 = vadd.f32 %v200, %v180
    %v202 = vadd.f32 %v201, %v188
    %v203 = vadd.f32 %v165, %v173
    %v204 = vadd.f32 %v203, %v181
    %v205 = vadd.f32 %v204, %v189
    %v206 = vadd.f32 %v166, %v174
    %v207 = vadd.f32 %v206, %v182
    %v208 = vadd.f32 %v207, %v190
    %v209 = vadd.f32 %v167, %v175
    %v210 = vadd.f32 %v209, %v183
    %v211 = vadd.f32 %v210, %v191
    %v212 = vadd.f32 %v168, %v176
    %v213 = vadd.f32 %v212, %v184
    %v214 = vadd.f32 %v213, %v192
    %v215 = vadd.f32 %v169, %v177
    %v216 = vadd.f32 %v215, %v185
    %v217 = vadd.f32 %v216, %v193
    %v218 = vld [vmem:[#allocation7] sm:$0xff]
    %v219 = vld [vmem:[#allocation7 + $0x8] sm:$0xff]
    %v220 = vld [vmem:[#allocation7 + $0x10] sm:$0xff]
    %v221 = vld [vmem:[#allocation7 + $0x18] sm:$0xff]
    %v222 = vld [vmem:[#allocation7 + $0x20] sm:$0xff]
    %v223 = vld [vmem:[#allocation7 + $0x28] sm:$0xff]
    %v224 = vld [vmem:[#allocation7 + $0x30] sm:$0xff]
    %v225 = vld [vmem:[#allocation7 + $0x38] sm:$0xff]
    %v226 = vadd.f32 %v218, %v196
    %v227 = vadd.f32 %v219, %v199
    %v228 = vadd.f32 %v220, %v202
    %v229 = vadd.f32 %v221, %v205
    %v230 = vadd.f32 %v222, %v208
    %v231 = vadd.f32 %v223, %v211
    %v232 = vadd.f32 %v224, %v214
    %v233 = vadd.f32 %v225, %v217
    %234 = vst [vmem:[#allocation7] sm:$0xff] %v226
    %235 = vst [vmem:[#allocation7 + $0x8] sm:$0xff] %v227
    %236 = vst [vmem:[#allocation7 + $0x10] sm:$0xff] %v228
    %237 = vst [vmem:[#allocation7 + $0x18] sm:$0xff] %v229
    %238 = vst [vmem:[#allocation7 + $0x20] sm:$0xff] %v230
    %239 = vst [vmem:[#allocation7 + $0x28] sm:$0xff] %v231
    %240 = vst [vmem:[#allocation7 + $0x30] sm:$0xff] %v232
    %241 = vst [vmem:[#allocation7 + $0x38] sm:$0xff] %v233
    // Predicated region
    $region22: #{tpu_custom_call.1} parent=1 // pred_check
      _
    $region23: #{tpu_custom_call.1} parent=1 // pred_check_branch
      %243 = sbr.rel (0) target = $region25
    $region24: #{tpu_custom_call.1} parent=1 // pred_region
      %s245 = ssub.s32 1024, 1024
      %246 = vsyncadd [#allocation4], %s245
      %s248 = sshll.u32 [#allocation7], 4
      %s249 = int_to_ptr.vmem [resolvable:$true] %s248
      %251 = dma.vmem_to_hbm [thread:$0]  %s249, 1024, %s2, [#allocation4]
    $region25: #{tpu_custom_call.1} parent=1 // pred_fallthru
      _
    // Predicated region
    $region26: #{tpu_custom_call.1} parent=1 // pred_check
      _
    $region27: #{tpu_custom_call.1} parent=1 // pred_check_branch
      %253 = sbr.rel (0) target = $region29
    $region28: #{tpu_custom_call.1} parent=1 // pred_region
      %254 = dma.done [#allocation4], 1024
    $region29: #{tpu_custom_call.1} parent=1 // pred_fallthru
      _
    %255 = vsyncpa [#allocation3], 1
    %256 = vsyncpa [#allocation6], 1
    %257 = vsyncpa [#allocation4], 1

</llo_original>
